<compile_context>
chip_gen: v7x
topology: tpu7x:2x2x1
jax: 0.10.0
libtpu: 0.0.40
codegen_flags: <defaults>
</compile_context>

<pallas_src>
import functools

import jax
import jax.numpy as jnp
from jax import lax
from jax.experimental import pallas as pl
from jax.experimental.pallas import tpu as pltpu


def _mha_kernel(h_ref, wqkv_ref, wo_ref, gamma_ref, beta_ref, out_ref,
                *, n_head, d_head, ln_eps):
    H, Dh = n_head, d_head
    hdh = H * Dh
    S = h_ref.shape[1]

    h = h_ref[0]                                         # (S, D) f32
    h_bf = h.astype(jnp.bfloat16)

    # --- fused QKV projection (single MXU matmul, contraction over D) ----
    # wqkv rows are [Wq*scale ; Wk ; Wv]  ->  (3*hdh, S), f32 accumulation.
    qkv_t = lax.dot_general(
        wqkv_ref[...], h_bf,
        dimension_numbers=(((1,), (1,)), ((), ())),
        preferred_element_type=jnp.float32)

    # --- split into head-batched (H, Dh, S) tensors -----------------------
    # Slices/reshapes touch only major/sublane dims; the lane dim (S) is
    # untouched, so no d_head-granularity lane relayouts.
    q_t = qkv_t[0 * hdh:1 * hdh].reshape(H, Dh, S)
    k_t = qkv_t[1 * hdh:2 * hdh].reshape(H, Dh, S)
    v_t = qkv_t[2 * hdh:3 * hdh].reshape(H, Dh, S)

    q = jnp.swapaxes(q_t, 1, 2).astype(jnp.bfloat16)     # (H, Sq, Dh)
    k_bf = k_t.astype(jnp.bfloat16)                      # (H, Dh, Sk)
    v_bf = v_t.astype(jnp.bfloat16)                      # (H, Dh, Sk)

    # --- head-batched attention -------------------------------------------
    # scores: contract Dh, batch over heads -> (H, Sq, Sk), f32
    scores = lax.dot_general(
        q, k_bf, dimension_numbers=(((2,), (1,)), ((0,), (0,))),
        preferred_element_type=jnp.float32)

    # softmax over keys (numerically stable, f32; scale already folded in q)
    scores = scores - jnp.max(scores, axis=-1, keepdims=True)
    p = jnp.exp(scores)
    p = p * pl.reciprocal(jnp.sum(p, axis=-1, keepdims=True), approx=True)
    p_bf = p.astype(jnp.bfloat16)

    # attn_vec^T: contract Sk, batch over heads -> (H, Dh, Sq), f32
    av_t = lax.dot_general(
        v_bf, p_bf, dimension_numbers=(((2,), (2,)), ((0,), (0,))),
        preferred_element_type=jnp.float32)

    # --- single output projection (full H*Dh contraction) -----------------
    av = jnp.swapaxes(av_t.reshape(hdh, S), 0, 1)        # (Sq, hdh) f32
    attn_out = jnp.dot(av.astype(jnp.bfloat16), wo_ref[...],
                       preferred_element_type=jnp.float32)   # (S, D) f32

    # --- residual + post-LayerNorm (f32) -----------------------------------
    x = h + attn_out
    mean = jnp.mean(x, axis=-1, keepdims=True)
    xc = x - mean
    var = jnp.mean(xc * xc, axis=-1, keepdims=True)
    y = xc * lax.rsqrt(var + ln_eps) * gamma_ref[...] + beta_ref[...]
    out_ref[0] = y.astype(out_ref.dtype)


def multi_head_attn(h_sbd, wq_t, wkv_t, wo_t, gamma, beta,
                    *, n_head, d_head, scale, ln_eps=1e-5):
    """h_sbd: (seq, batch, d_model) fp32, PyTorch layout. Returns same layout."""
    S, B, D = h_sbd.shape
    hdh = n_head * d_head

    # TODO(synk): callers holding (batch, seq, d_model) activations can drop
    # these two XLA-level transposes entirely.
    h_bsd = jnp.transpose(h_sbd, (1, 0, 2))                       # (B, S, D)

    # Fused projection weight, rows = [Wq * scale ; Wk ; Wv]; bf16 for the MXU.
    wqkv_rows = jnp.concatenate(
        [(wq_t * scale).T, wkv_t[:, :hdh].T, wkv_t[:, hdh:].T],
        axis=0).astype(jnp.bfloat16)                              # (3*hdh, D)
    wo_bf = wo_t.astype(jnp.bfloat16)                             # (hdh, D)

    kernel = functools.partial(_mha_kernel, n_head=n_head, d_head=d_head,
                               ln_eps=ln_eps)

    out_bsd = pl.pallas_call(
        kernel,
        out_shape=jax.ShapeDtypeStruct((B, S, D), h_sbd.dtype),
        grid_spec=pltpu.PrefetchScalarGridSpec(
            num_scalar_prefetch=0,
            grid=(B,),
            in_specs=[
                pl.BlockSpec((1, S, D), lambda b: (b, 0, 0)),     # h
                pl.BlockSpec((3 * hdh, D), lambda b: (0, 0)),     # fused W_qkv
                pl.BlockSpec((hdh, D), lambda b: (0, 0)),         # W_o
                pl.BlockSpec((1, D), lambda b: (0, 0)),           # ln gamma
                pl.BlockSpec((1, D), lambda b: (0, 0)),           # ln beta
            ],
            out_specs=pl.BlockSpec((1, S, D), lambda b: (b, 0, 0)),
        ),
        compiler_params=pltpu.CompilerParams(
            dimension_semantics=("parallel",),
            vmem_limit_bytes=32 * 1024 * 1024),
    )(h_bsd, wqkv_rows, wo_bf, gamma, beta)

    return jnp.transpose(out_bsd, (1, 0, 2))                      # (S, B, D)


def _reference(h_sbd, wq_t, wkv_t, wo_t, gamma, beta, *, n_head, d_head, scale,
               ln_eps=1e-5):
    """Pure-JAX f32 reference mirroring the PyTorch forward (no mems/mask)."""
    S, B, D = h_sbd.shape
    head_q = (h_sbd @ wq_t).reshape(S, B, n_head, d_head)
    kv = h_sbd @ wkv_t
    head_k = kv[..., :n_head * d_head].reshape(S, B, n_head, d_head)
    head_v = kv[..., n_head * d_head:].reshape(S, B, n_head, d_head)
    attn_score = jnp.einsum('ibnd,jbnd->ijbn', head_q, head_k) * scale
    attn_prob = jax.nn.softmax(attn_score, axis=1)
    attn_vec = jnp.einsum('ijbn,jbnd->ibnd', attn_prob, head_v)
    attn_vec = attn_vec.reshape(S, B, n_head * d_head)
    attn_out = attn_vec @ wo_t
    x = h_sbd + attn_out
    mean = jnp.mean(x, axis=-1, keepdims=True)
    var = jnp.mean((x - mean) ** 2, axis=-1, keepdims=True)
    return (x - mean) / jnp.sqrt(var + ln_eps) * gamma[0] + beta[0]


if __name__ == "__main__":
    # module config
    n_head, d_model, d_head = 4, 32, 8
    dropout = 0.0                      # eval-mode: dropout is identity
    scale = 1.0 / (d_head ** 0.5)

    # small shapes consistent with forward: h is (seq, batch, d_model)
    seq, batch = 8, 2

    key = jax.random.PRNGKey(0)
    k_h, k_q, k_kv, k_o = jax.random.split(key, 4)

    h = jax.random.normal(k_h, (seq, batch, d_model), jnp.float32)

    # deterministic parameter init (Linear weights stored transposed: x @ W^T)
    bound_q = 1.0 / (d_model ** 0.5)
    wq_t = jax.random.uniform(k_q, (d_model, n_head * d_head), jnp.float32,
                              -bound_q, bound_q)
    wkv_t = jax.random.uniform(k_kv, (d_model, 2 * n_head * d_head), jnp.float32,
                               -bound_q, bound_q)
    bound_o = 1.0 / ((n_head * d_head) ** 0.5)
    wo_t = jax.random.uniform(k_o, (n_head * d_head, d_model), jnp.float32,
                              -bound_o, bound_o)
    gamma = jnp.ones((1, d_model), jnp.float32)    # nn.LayerNorm weight init
    beta = jnp.zeros((1, d_model), jnp.float32)    # nn.LayerNorm bias init

    out = multi_head_attn(h, wq_t, wkv_t, wo_t, gamma, beta,
                          n_head=n_head, d_head=d_head, scale=scale)
    out = jax.block_until_ready(out)

    ref = _reference(h, wq_t, wkv_t, wo_t, gamma, beta,
                     n_head=n_head, d_head=d_head, scale=scale)
    assert out.shape == (seq, batch, d_model)
    # bf16 MXU operands + approx reciprocal -> relaxed tolerance vs f32 ref.
    assert jnp.allclose(out, ref, atol=3e-2, rtol=3e-2), "mismatch vs reference"

    print("KERNEL_OK")
</pallas_src>

<mosaic_0001>
module attributes {stable_mosaic.version = 11 : i64} {
  func.func @_mha_kernel(%arg0: i32, %arg1: memref<1x8x32xf32, #tpu.memory_space<vmem>>, %arg2: memref<96x32xbf16, #tpu.memory_space<vmem>>, %arg3: memref<32x32xbf16, #tpu.memory_space<vmem>>, %arg4: memref<1x32xf32, #tpu.memory_space<vmem>>, %arg5: memref<1x32xf32, #tpu.memory_space<vmem>>, %arg6: memref<1x8x32xf32, #tpu.memory_space<vmem>>) attributes {dimension_semantics = [#tpu.dimension_semantics<parallel>], iteration_bounds = array<i64: 2>, scalar_prefetch = 0 : i64, scratch_operands = 0 : i64, tpu.core_type = #tpu.core_type<tc>, window_params = [{transform_indices = @transform_0, window_bounds = array<i64: 1, 8, 32>}, {pipeline_mode = #tpu.pipeline_mode<synchronous>, transform_indices = @transform_1, window_bounds = array<i64: 96, 32>}, {pipeline_mode = #tpu.pipeline_mode<synchronous>, transform_indices = @transform_2, window_bounds = array<i64: 32, 32>}, {pipeline_mode = #tpu.pipeline_mode<synchronous>, transform_indices = @transform_3, window_bounds = array<i64: 1, 32>}, {pipeline_mode = #tpu.pipeline_mode<synchronous>, transform_indices = @transform_4, window_bounds = array<i64: 1, 32>}, {transform_indices = @transform_5, window_bounds = array<i64: 1, 8, 32>}]} {
    %c0 = arith.constant 0 : index
    %c0_0 = arith.constant 0 : index
    %c0_1 = arith.constant 0 : index
    %0 = vector.load %arg1[%c0, %c0_0, %c0_1] : memref<1x8x32xf32, #tpu.memory_space<vmem>>, vector<1x8x32xf32>
    %1 = vector.shape_cast %0 : vector<1x8x32xf32> to vector<8x32xf32>
    %2 = arith.truncf %1 : vector<8x32xf32> to vector<8x32xbf16>
    %c0_2 = arith.constant 0 : index
    %c0_3 = arith.constant 0 : index
    %3 = vector.load %arg2[%c0_2, %c0_3] : memref<96x32xbf16, #tpu.memory_space<vmem>>, vector<96x32xbf16>
    %cst = arith.constant dense<0.000000e+00> : vector<96x8xf32>
    %4 = tpu.matmul %3, %2, %cst {dimension_numbers = #tpu.dot_dimension_numbers<[1], [1], [0], [0], [0, 0, 1, 0], [], []>} : vector<96x32xbf16>, vector<8x32xbf16>, vector<96x8xf32> -> vector<96x8xf32>
    %5 = vector.extract_strided_slice %4 {offsets = [0, 0], sizes = [32, 8], strides = [1, 1]} : vector<96x8xf32> to vector<32x8xf32>
    %6 = vector.shape_cast %5 : vector<32x8xf32> to vector<4x8x8xf32>
    %7 = vector.extract_strided_slice %4 {offsets = [32, 0], sizes = [32, 8], strides = [1, 1]} : vector<96x8xf32> to vector<32x8xf32>
    %8 = vector.shape_cast %7 : vector<32x8xf32> to vector<4x8x8xf32>
    %9 = vector.extract_strided_slice %4 {offsets = [64, 0], sizes = [32, 8], strides = [1, 1]} : vector<96x8xf32> to vector<32x8xf32>
    %10 = vector.shape_cast %9 : vector<32x8xf32> to vector<4x8x8xf32>
    %11 = tpu.transpose %6, [0, 2, 1] : vector<4x8x8xf32> -> vector<4x8x8xf32>
    %12 = arith.truncf %11 : vector<4x8x8xf32> to vector<4x8x8xbf16>
    %13 = arith.truncf %8 : vector<4x8x8xf32> to vector<4x8x8xbf16>
    %14 = arith.truncf %10 : vector<4x8x8xf32> to vector<4x8x8xbf16>
    %cst_4 = arith.constant dense<0.000000e+00> : vector<4x8x8xf32>
    %15 = tpu.matmul %12, %13, %cst_4 {dimension_numbers = #tpu.dot_dimension_numbers<[2], [1], [1], [2], [0, 0, 0, 1, 1, 2], [0], [0]>} : vector<4x8x8xbf16>, vector<4x8x8xbf16>, vector<4x8x8xf32> -> vector<4x8x8xf32>
    %cst_5 = arith.constant dense<0xFF800000> : vector<4x8xf32>
    %16 = vector.multi_reduction <maximumf>, %15, %cst_5 [2] : vector<4x8x8xf32> to vector<4x8xf32>
    %17 = vector.shape_cast %16 : vector<4x8xf32> to vector<4x8x1xf32>
    %18 = vector.broadcast %17 : vector<4x8x1xf32> to vector<4x8x8xf32>
    %19 = arith.subf %15, %18 : vector<4x8x8xf32>
    %20 = math.exp %19 : vector<4x8x8xf32>
    %cst_6 = arith.constant dense<0.000000e+00> : vector<4x8xf32>
    %21 = vector.multi_reduction <add>, %20, %cst_6 [2] : vector<4x8x8xf32> to vector<4x8xf32>
    %22 = vector.shape_cast %21 : vector<4x8xf32> to vector<4x8x1xf32>
    %23 = tpu.reciprocal %22 {approx = true} : vector<4x8x1xf32> -> vector<4x8x1xf32>
    %24 = vector.broadcast %23 : vector<4x8x1xf32> to vector<4x8x8xf32>
    %25 = arith.mulf %20, %24 : vector<4x8x8xf32>
    %26 = arith.truncf %25 : vector<4x8x8xf32> to vector<4x8x8xbf16>
    %cst_7 = arith.constant dense<0.000000e+00> : vector<4x8x8xf32>
    %27 = tpu.matmul %14, %26, %cst_7 {dimension_numbers = #tpu.dot_dimension_numbers<[2], [2], [1], [1], [0, 0, 0, 1, 1, 1], [0], [0]>} : vector<4x8x8xbf16>, vector<4x8x8xbf16>, vector<4x8x8xf32> -> vector<4x8x8xf32>
    %28 = vector.shape_cast %27 : vector<4x8x8xf32> to vector<32x8xf32>
    %29 = tpu.transpose %28, [1, 0] : vector<32x8xf32> -> vector<8x32xf32>
    %30 = arith.truncf %29 : vector<8x32xf32> to vector<8x32xbf16>
    %c0_8 = arith.constant 0 : index
    %c0_9 = arith.constant 0 : index
    %31 = vector.load %arg3[%c0_8, %c0_9] : memref<32x32xbf16, #tpu.memory_space<vmem>>, vector<32x32xbf16>
    %cst_10 = arith.constant dense<0.000000e+00> : vector<8x32xf32>
    %32 = tpu.matmul %30, %31, %cst_10 {dimension_numbers = #tpu.dot_dimension_numbers<[1], [0], [0], [1], [0, 0, 1, 1], [], []>} : vector<8x32xbf16>, vector<32x32xbf16>, vector<8x32xf32> -> vector<8x32xf32>
    %33 = arith.addf %1, %32 : vector<8x32xf32>
    %cst_11 = arith.constant dense<0.000000e+00> : vector<8xf32>
    %34 = vector.multi_reduction <add>, %33, %cst_11 [1] : vector<8x32xf32> to vector<8xf32>
    %35 = vector.shape_cast %34 : vector<8xf32> to vector<8x1xf32>
    %cst_12 = arith.constant 3.200000e+01 : f32
    %36 = vector.broadcast %cst_12 : f32 to vector<8x1xf32>
    %37 = arith.divf %35, %36 : vector<8x1xf32>
    %38 = vector.broadcast %37 : vector<8x1xf32> to vector<8x32xf32>
    %39 = arith.subf %33, %38 : vector<8x32xf32>
    %40 = arith.mulf %39, %39 : vector<8x32xf32>
    %cst_13 = arith.constant dense<0.000000e+00> : vector<8xf32>
    %41 = vector.multi_reduction <add>, %40, %cst_13 [1] : vector<8x32xf32> to vector<8xf32>
    %42 = vector.shape_cast %41 : vector<8xf32> to vector<8x1xf32>
    %cst_14 = arith.constant 3.200000e+01 : f32
    %43 = vector.broadcast %cst_14 : f32 to vector<8x1xf32>
    %44 = arith.divf %42, %43 : vector<8x1xf32>
    %cst_15 = arith.constant 9.99999974E-6 : f32
    %45 = vector.broadcast %cst_15 : f32 to vector<8x1xf32>
    %46 = arith.addf %44, %45 : vector<8x1xf32>
    %47 = math.rsqrt %46 : vector<8x1xf32>
    %48 = vector.broadcast %47 : vector<8x1xf32> to vector<8x32xf32>
    %49 = arith.mulf %39, %48 : vector<8x32xf32>
    %c0_16 = arith.constant 0 : index
    %c0_17 = arith.constant 0 : index
    %50 = vector.load %arg4[%c0_16, %c0_17] : memref<1x32xf32, #tpu.memory_space<vmem>>, vector<1x32xf32>
    %51 = vector.broadcast %50 : vector<1x32xf32> to vector<8x32xf32>
    %52 = arith.mulf %49, %51 : vector<8x32xf32>
    %c0_18 = arith.constant 0 : index
    %c0_19 = arith.constant 0 : index
    %53 = vector.load %arg5[%c0_18, %c0_19] : memref<1x32xf32, #tpu.memory_space<vmem>>, vector<1x32xf32>
    %54 = vector.broadcast %53 : vector<1x32xf32> to vector<8x32xf32>
    %55 = arith.addf %52, %54 : vector<8x32xf32>
    %c0_20 = arith.constant 0 : index
    %c0_21 = arith.constant 0 : index
    %c0_22 = arith.constant 0 : index
    %56 = vector.load %arg6[%c0_20, %c0_21, %c0_22] : memref<1x8x32xf32, #tpu.memory_space<vmem>>, vector<1x8x32xf32>
    %57 = vector.shape_cast %56 : vector<1x8x32xf32> to vector<8x32xf32>
    %58 = vector.shape_cast %55 : vector<8x32xf32> to vector<1x8x32xf32>
    tpu.vector_store %arg6[%c0_20, %c0_21, %c0_22], %58 {strides = array<i32>} : memref<1x8x32xf32, #tpu.memory_space<vmem>>, vector<1x8x32xf32>,
    return
  }
  func.func @transform_0(%arg0: i32) -> (i32, i32, i32) {
    %c0_i32 = arith.constant 0 : i32
    %c0_i32_0 = arith.constant 0 : i32
    %c0_i32_1 = arith.constant 0 : i32
    return %arg0, %c0_i32, %c0_i32_0 : i32, i32, i32
  }
  func.func @transform_1(%arg0: i32) -> (i32, i32) {
    %c0_i32 = arith.constant 0 : i32
    %c0_i32_0 = arith.constant 0 : i32
    %c0_i32_1 = arith.constant 0 : i32
    return %c0_i32, %c0_i32_0 : i32, i32
  }
  func.func @transform_2(%arg0: i32) -> (i32, i32) {
    %c0_i32 = arith.constant 0 : i32
    %c0_i32_0 = arith.constant 0 : i32
    %c0_i32_1 = arith.constant 0 : i32
    return %c0_i32, %c0_i32_0 : i32, i32
  }
  func.func @transform_3(%arg0: i32) -> (i32, i32) {
    %c0_i32 = arith.constant 0 : i32
    %c0_i32_0 = arith.constant 0 : i32
    %c0_i32_1 = arith.constant 0 : i32
    return %c0_i32, %c0_i32_0 : i32, i32
  }
  func.func @transform_4(%arg0: i32) -> (i32, i32) {
    %c0_i32 = arith.constant 0 : i32
    %c0_i32_0 = arith.constant 0 : i32
    %c0_i32_1 = arith.constant 0 : i32
    return %c0_i32, %c0_i32_0 : i32, i32
  }
  func.func @transform_5(%arg0: i32) -> (i32, i32, i32) {
    %c0_i32 = arith.constant 0 : i32
    %c0_i32_0 = arith.constant 0 : i32
    %c0_i32_1 = arith.constant 0 : i32
    return %arg0, %c0_i32, %c0_i32_0 : i32, i32, i32
  }
}

</mosaic_0001>

<llo_original>
// kernel: tpu_custom_call.1
$region0: #{tpu_custom_call.1}
  #allocation0 [shape = 'u32[]', space=smem, size = 0x4, offset = 0x4, fixed_abs, tag = 'smem constant byte address 0x4 - core index']
  #allocation1 [shape = 'u32[144,128]{1,0:T(1,128)}', space=vmem, size = 0x12000, scoped, tag = 'internal scratch']
  %s0 = inlined_call_operand.vmem [shape: f32[2,8,32], index: 0, kind: input, shape index: {}]
  %s1 = inlined_call_operand.vmem [shape: bf16[96,32], index: 1, kind: input, shape index: {}]
  %s2 = inlined_call_operand.vmem [shape: bf16[32,32], index: 2, kind: input, shape index: {}]
  %s3 = inlined_call_operand.vmem [shape: f32[1,32], index: 3, kind: input, shape index: {}]
  %s4 = inlined_call_operand.vmem [shape: f32[1,32], index: 4, kind: input, shape index: {}]
  %s5 = inlined_call_operand.hbm [shape: f32[2,8,32], index: 5, kind: output, shape index: {}]
  %s6 = sld [smem:[#allocation0]]
  $region53: #{tpu_custom_call.1} parent=0
    _
  %s8 = ssub.s32 1, %s6
  %s9 = scalar_select 0, %s8, %s6
  $region1: #{tpu_custom_call.1} parent=0
    #allocation2 [shape = 'u8[8192]{0}', space=vmem, size = 0x2000, scoped, tag = 'output window, operand 0']
    #allocation3 [shape = 's32[2]{0}', space=sflag, size = 0x8, scoped, tag = 'scoped memory for tpu_custom_call.1']
    %10 = vsyncpa [#allocation3], 0
    %s11 = scalar_lea.sflag [#allocation3], 1
    %12 = vsyncpa %s11, 0
    loop: start=0, step=1, limit=4
    $region2: #{tpu_custom_call.1} parent=1 // loop_pre_header
      _
    $region3: #{tpu_custom_call.1} parent=1 // loop_header
      %s14 = sphi 0, %s18
      %p15 = scmp.ge.s32.totalorder %s14, 4
      %s24 = sphi 0, %s26
      %s27 = sphi 0, %s24
      %s28 = sphi 0, %s27
      %s44 = sphi 0, %s28
      %s48 = sphi 0, %s48
      %s50 = sphi 0, %s48
      %s51 = sphi 0, %s50
      %s65 = sphi 0, %s51
      %s69 = sphi 0, %s69
      %s71 = sphi 0, %s69
      %s72 = sphi 0, %s71
      %s86 = sphi 0, %s72
      %s90 = sphi 0, %s90
      %s92 = sphi 0, %s90
      %s93 = sphi 0, %s92
      %s107 = sphi 0, %s93
      %s111 = sphi 0, %s111
      %s113 = sphi 0, %s111
      %s114 = sphi 0, %s113
      %s128 = sphi 0, %s114
      %s134 = sphi 0, %s136
      %s137 = sphi 0, %s134
      %s138 = sphi 0, %s137
      %s154 = sphi 0, %s138
    $region4: #{tpu_custom_call.1} parent=1 // loop_header_branch
      %17 = sbr.rel (%p15) target = $region8
    $region5: #{tpu_custom_call.1} parent=1 // loop_body
      %s19 = ssub.s32 %s14, 1
      %s20 = ssub.s32 %s14, 2
      %s21 = sadd.s32 %s14, 1
      %s22 = ssub.s32 %s14, %s21
      %p23 = scmp.eq.s32.totalorder %s22, 0
      %s25 = sadd.s32 %s24, 1
      %s26 = scalar_select %p23, %s24, %s25
      %p29 = pneg %p23
      %p30 = scmp.eq.s32.totalorder %s14, 1
      %p31 = por %p29, %p30
      %p32 = scmp.ne.s32.totalorder %s24, %s27
      %p33 = scmp.eq.s32.totalorder %s14, 0
      %p34 = por %p32, %p33
      %p35 = scmp.ne.s32.totalorder %s24, %s27
      %p36 = scmp.eq.s32.totalorder %s19, 1
      %p37 = por %p35, %p36
      %p38 = scmp.ne.s32.totalorder %s27, %s28
      %p39 = scmp.eq.s32.totalorder %s19, 0
      %p40 = por %p38, %p39
      %p41 = scmp.ne.s32.totalorder %s27, %s28
      %p42 = scmp.eq.s32.totalorder %s20, 1
      %p43 = por %p41, %p42
      %p45 = scmp.ne.s32.totalorder %s28, %s44
      %p46 = scmp.eq.s32.totalorder %s20, 0
      %p47 = por %p45, %p46
      %s49 = sadd.s32 %s48, 1
      %p52 = scmp.eq.s32.totalorder %s14, 1
      %p53 = scmp.ne.s32.totalorder %s48, %s50
      %p54 = scmp.eq.s32.totalorder %s14, 0
      %p55 = por %p53, %p54
      %p56 = scmp.ne.s32.totalorder %s48, %s50
      %p57 = scmp.eq.s32.totalorder %s19, 1
      %p58 = por %p56, %p57
      %p59 = scmp.ne.s32.totalorder %s50, %s51
      %p60 = scmp.eq.s32.totalorder %s19, 0
      %p61 = por %p59, %p60
      %p62 = scmp.ne.s32.totalorder %s50, %s51
      %p63 = scmp.eq.s32.totalorder %s20, 1
      %p64 = por %p62, %p63
      %p66 = scmp.ne.s32.totalorder %s51, %s65
      %p67 = scmp.eq.s32.totalorder %s20, 0
      %p68 = por %p66, %p67
      %s70 = sadd.s32 %s69, 1
      %p73 = scmp.eq.s32.totalorder %s14, 1
      %p74 = scmp.ne.s32.totalorder %s69, %s71
      %p75 = scmp.eq.s32.totalorder %s14, 0
      %p76 = por %p74, %p75
      %p77 = scmp.ne.s32.totalorder %s69, %s71
      %p78 = scmp.eq.s32.totalorder %s19, 1
      %p79 = por %p77, %p78
      %p80 = scmp.ne.s32.totalorder %s71, %s72
      %p81 = scmp.eq.s32.totalorder %s19, 0
      %p82 = por %p80, %p81
      %p83 = scmp.ne.s32.totalorder %s71, %s72
      %p84 = scmp.eq.s32.totalorder %s20, 1
      %p85 = por %p83, %p84
      %p87 = scmp.ne.s32.totalorder %s72, %s86
      %p88 = scmp.eq.s32.totalorder %s20, 0
      %p89 = por %p87, %p88
      %s91 = sadd.s32 %s90, 1
      %p94 = scmp.eq.s32.totalorder %s14, 1
      %p95 = scmp.ne.s32.totalorder %s90, %s92
      %p96 = scmp.eq.s32.totalorder %s14, 0
      %p97 = por %p95, %p96
      %p98 = scmp.ne.s32.totalorder %s90, %s92
      %p99 = scmp.eq.s32.totalorder %s19, 1
      %p100 = por %p98, %p99
      %p101 = scmp.ne.s32.totalorder %s92, %s93
      %p102 = scmp.eq.s32.totalorder %s19, 0
      %p103 = por %p101, %p102
      %p104 = scmp.ne.s32.totalorder %s92, %s93
      %p105 = scmp.eq.s32.totalorder %s20, 1
      %p106 = por %p104, %p105
      %p108 = scmp.ne.s32.totalorder %s93, %s107
      %p109 = scmp.eq.s32.totalorder %s20, 0
      %p110 = por %p108, %p109
      %s112 = sadd.s32 %s111, 1
      %p115 = scmp.eq.s32.totalorder %s14, 1
      %p116 = scmp.ne.s32.totalorder %s111, %s113
      %p117 = scmp.eq.s32.totalorder %s14, 0
      %p118 = por %p116, %p117
      %p119 = scmp.ne.s32.totalorder %s111, %s113
      %p120 = scmp.eq.s32.totalorder %s19, 1
      %p121 = por %p119, %p120
      %p122 = scmp.ne.s32.totalorder %s113, %s114
      %p123 = scmp.eq.s32.totalorder %s19, 0
      %p124 = por %p122, %p123
      %p125 = scmp.ne.s32.totalorder %s113, %s114
      %p126 = scmp.eq.s32.totalorder %s20, 1
      %p127 = por %p125, %p126
      %p129 = scmp.ne.s32.totalorder %s114, %s128
      %p130 = scmp.eq.s32.totalorder %s20, 0
      %p131 = por %p129, %p130
      %s132 = ssub.s32 %s14, %s21
      %p133 = scmp.eq.s32.totalorder %s132, 0
      %s135 = sadd.s32 %s134, 1
      %s136 = scalar_select %p133, %s134, %s135
      %p139 = pneg %p133
      %p140 = scmp.eq.s32.totalorder %s14, 1
      %p141 = por %p139, %p140
      %p142 = scmp.ne.s32.totalorder %s134, %s137
      %p143 = scmp.eq.s32.totalorder %s14, 0
      %p144 = por %p142, %p143
      %p145 = scmp.ne.s32.totalorder %s134, %s137
      %p146 = scmp.eq.s32.totalorder %s19, 1
      %p147 = por %p145, %p146
      %p148 = scmp.ne.s32.totalorder %s137, %s138
      %p149 = scmp.eq.s32.totalorder %s19, 0
      %p150 = por %p148, %p149
      %p151 = scmp.ne.s32.totalorder %s137, %s138
      %p152 = scmp.eq.s32.totalorder %s20, 1
      %p153 = por %p151, %p152
      %p155 = scmp.ne.s32.totalorder %s138, %s154
      %p156 = scmp.eq.s32.totalorder %s20, 0
      %p157 = por %p155, %p156
      %p158 = scmp.le.s32.totalorder 1, %s14
      %p159 = scmp.lt.s32.totalorder %s14, 3
      %p160 = pnand %p158, %p159
      %p161 = pneg %p160
      // Predicated region
      $region9: #{tpu_custom_call.1} parent=5 // pred_check
        _
      $region10: #{tpu_custom_call.1} parent=5 // pred_check_branch
        %163 = sbr.rel (%p160) target = $region12
      $region11: #{tpu_custom_call.1} parent=5 // pred_region
        %s164 = ssub.s32 %s14, 1
        // Predicated region
        $region13: #{tpu_custom_call.1} parent=11 // pred_check
          %p165 = pneg %p61
        $region14: #{tpu_custom_call.1} parent=11 // pred_check_branch
          %167 = sbr.rel (%p165) target = $region16
        $region15: #{tpu_custom_call.1} parent=11 // pred_region
          _
        $region16: #{tpu_custom_call.1} parent=11 // pred_fallthru
          _
        // Predicated region
        $region17: #{tpu_custom_call.1} parent=11 // pred_check
          %p168 = pneg %p82
        $region18: #{tpu_custom_call.1} parent=11 // pred_check_branch
          %170 = sbr.rel (%p168) target = $region20
        $region19: #{tpu_custom_call.1} parent=11 // pred_region
          _
        $region20: #{tpu_custom_call.1} parent=11 // pred_fallthru
          _
        // Predicated region
        $region21: #{tpu_custom_call.1} parent=11 // pred_check
          %p171 = pneg %p103
        $region22: #{tpu_custom_call.1} parent=11 // pred_check_branch
          %173 = sbr.rel (%p171) target = $region24
        $region23: #{tpu_custom_call.1} parent=11 // pred_region
          _
        $region24: #{tpu_custom_call.1} parent=11 // pred_fallthru
          _
        // Predicated region
        $region25: #{tpu_custom_call.1} parent=11 // pred_check
          %p174 = pneg %p124
        $region26: #{tpu_custom_call.1} parent=11 // pred_check_branch
          %176 = sbr.rel (%p174) target = $region28
        $region27: #{tpu_custom_call.1} parent=11 // pred_region
          _
        $region28: #{tpu_custom_call.1} parent=11 // pred_fallthru
          _
      $region12: #{tpu_custom_call.1} parent=5 // pred_fallthru
        _
      %p177 = scmp.lt.s32.totalorder %s14, 2
      // Predicated region
      $region29: #{tpu_custom_call.1} parent=5 // pred_check
        %p178 = pneg %p177
      $region30: #{tpu_custom_call.1} parent=5 // pred_check_branch
        %180 = sbr.rel (%p178) target = $region32
      $region31: #{tpu_custom_call.1} parent=5 // pred_region
        // Predicated region
        $region33: #{tpu_custom_call.1} parent=31 // pred_check
          %p181 = pneg %p34
        $region34: #{tpu_custom_call.1} parent=31 // pred_check_branch
          %183 = sbr.rel (%p181) target = $region36
        $region35: #{tpu_custom_call.1} parent=31 // pred_region
          %p184 = scmp.lt.s32.totalorder %s14, 1
          %s185 = scalar_select %p184, %s14, 1
          %s186 = smul.addr %s185, 8
          %s187 = scalar_lea.vmem %s0, %s186
        $region36: #{tpu_custom_call.1} parent=31 // pred_fallthru
          _
      $region32: #{tpu_custom_call.1} parent=5 // pred_fallthru
        _
      %p188 = scmp.le.s32.totalorder 1, %s14
      %p189 = scmp.lt.s32.totalorder %s14, 3
      %p190 = pnand %p188, %p189
      %p191 = pneg %p190
      // Predicated region
      $region37: #{tpu_custom_call.1} parent=5 // pred_check
        _
      $region38: #{tpu_custom_call.1} parent=5 // pred_check_branch
        %193 = sbr.rel (%p190) target = $region40
      $region39: #{tpu_custom_call.1} parent=5 // pred_region
        %s194 = ssub.s32 %s14, 1
        %p195 = scmp.lt.s32.totalorder %s19, 1
        %s196 = scalar_select %p195, %s19, 1
        %s197 = smul.addr %s196, 8
        %s198 = scalar_lea.vmem %s0, %s197
        %p199 = pneg %p40
        %p200 = pneg %p37
        %p201 = pneg %p61
        %p202 = pneg %p58
        %p203 = pneg %p82
        %p204 = pneg %p79
        %p205 = pneg %p103
        %p206 = pneg %p100
        %p207 = pneg %p124
        %p208 = pneg %p121
        %p209 = pneg %p150
        %p210 = pneg %p147
        %s211 = sand.u32 %s137, 1
        %s212 = scalar_lea.sflag [#allocation3], %s211
        %s213 = sand.u32 %s137, 1
        %s214 = smul.addr %s213, 8
        %s215 = scalar_lea.vmem [#allocation2], %s214
        %p216 = scmp.lt.s32.totalorder %s19, 1
        %s217 = scalar_select %p216, %s19, 1
        %s218 = smul.addr %s217, 8
        %s219 = scalar_lea.vmem %s0, %s218
        %v221 = vld [vmem:[%s219] sm:$0xff]
        %v222 = vpack.c.bf16 %v221, %v221
        %v223 = vld [vmem:[%s1] sm:$0xf]
        %v224 = vld [vmem:[%s1 + $0x4] sm:$0xf]
        %v225 = vld [vmem:[%s1 + $0x8] sm:$0xf]
        %v226 = vld [vmem:[%s1 + $0xc] sm:$0xf]
        %v227 = vld [vmem:[%s1 + $0x10] sm:$0xf]
        %v228 = vld [vmem:[%s1 + $0x14] sm:$0xf]
        %v229 = vld [vmem:[%s1 + $0x18] sm:$0xf]
        %v230 = vld [vmem:[%s1 + $0x1c] sm:$0xf]
        %v231 = vld [vmem:[%s1 + $0x20] sm:$0xf]
        %v232 = vld [vmem:[%s1 + $0x24] sm:$0xf]
        %v233 = vld [vmem:[%s1 + $0x28] sm:$0xf]
        %v234 = vld [vmem:[%s1 + $0x2c] sm:$0xf]
        %v247 = vunpack.c.l.b16 %v223
        %v248 = vunpack.c.l.b16 %v224
        %v249 = vunpack.c.l.b16 %v225
        %v250 = vunpack.c.l.b16 %v226
        %v251 = vunpack.c.l.b16 %v227
        %v252 = vunpack.c.l.b16 %v228
        %v253 = vunpack.c.l.b16 %v229
        %v254 = vunpack.c.l.b16 %v230
        %v255 = vunpack.c.l.b16 %v231
        %v256 = vunpack.c.l.b16 %v232
        %v257 = vunpack.c.l.b16 %v233
        %v258 = vunpack.c.l.b16 %v234
        %v259 = vpack.c.b16 %v248, %v247
        %v260 = vpack.c.b16 %v250, %v249
        %v261 = vpack.c.b16 %v252, %v251
        %v262 = vpack.c.b16 %v254, %v253
        %v263 = vpack.c.b16 %v256, %v255
        %v264 = vpack.c.b16 %v258, %v257
        %vm265 = vcmask 261120
        %v267 = vsel %vm265, %v259, 0
        %v270 = vsel %vm265, %v260, 0
        %v273 = vsel %vm265, %v261, 0
        %v276 = vsel %vm265, %v262, 0
        %v279 = vsel %vm265, %v263, 0
        %v282 = vsel %vm265, %v264, 0
        %v285 = vsel %vm265, %v222, 0
        %287 = vmatprep.subr.bf16.mxu0 0
        %288 = vmatpush1.bf16.xpose.msra.mxu0 %v285
        %289 = vmatprep.subr.bf16.mxu0 0
        %290 = vmatpush1.bf16.xpose.msra.mxu0 0
        %291 = vmatprep.subr.bf16.mxu0 0
        %292 = vmatpush1.bf16.xpose.msra.mxu0 0
        %293 = vmatprep.subr.bf16.mxu0 0
        %294 = vmatpush1.bf16.xpose.msra.mxu0 0
        %295 = vmatprep.subr.bf16.mxu0 0
        %296 = vmatpush1.bf16.xpose.msra.mxu0 0
        %297 = vmatprep.subr.bf16.mxu0 0
        %298 = vmatpush1.bf16.xpose.msra.mxu0 0
        %299 = vmatprep.subr.bf16.mxu0 0
        %300 = vmatpush1.bf16.xpose.msra.mxu0 0
        %301 = vmatprep.subr.bf16.mxu0 0
        %302 = vmatpush1.bf16.xpose.msra.mxu0 0
        %303 = vmatprep.subr.bf16.mxu0 0
        %304 = vmatpush1.bf16.xpose.msra.mxu0 0
        %305 = vmatprep.subr.bf16.mxu0 0
        %306 = vmatpush1.bf16.xpose.msra.mxu0 0
        %307 = vmatprep.subr.bf16.mxu0 0
        %308 = vmatpush1.bf16.xpose.msra.mxu0 0
        %309 = vmatprep.subr.bf16.mxu0 0
        %310 = vmatpush1.bf16.xpose.msra.mxu0 0
        %311 = vmatprep.subr.bf16.mxu0 0
        %312 = vmatpush1.bf16.xpose.msra.mxu0 0
        %313 = vmatprep.subr.bf16.mxu0 0
        %314 = vmatpush1.bf16.xpose.msra.mxu0 0
        %315 = vmatprep.subr.bf16.mxu0 0
        %316 = vmatpush1.bf16.xpose.msra.mxu0 0
        %317 = vmatprep.subr.bf16.mxu0 0
        %318 = vmatpush1.bf16.xpose.msra.mxu0 0
        %319 = vmatprep.mubr.bf16.mxu0 0
        %320 = vmatmul.mubr.bf16.gmra.mrb[0].mxu0 %v267
        %v321 = vpop.f32.mrb[0].mxu0
        %v322 = vadd.f32 0.0, %v321
        %v323 = vpop.f32.mrb[0].mxu0
        %v324 = vpop.f32.mrb[0].mxu0
        %v325 = vadd.f32 0.0, %v324
        %v326 = vpop.f32.mrb[0].mxu0
        %327 = vmatprep.mubr.bf16.mxu0 0
        %328 = vmatmul.mubr.bf16.gmra.mrb[0].mxu0 %v270
        %v329 = vpop.f32.mrb[0].mxu0
        %v330 = vadd.f32 0.0, %v329
        %v331 = vpop.f32.mrb[0].mxu0
        %v332 = vpop.f32.mrb[0].mxu0
        %v333 = vadd.f32 0.0, %v332
        %v334 = vpop.f32.mrb[0].mxu0
        %335 = vmatprep.mubr.bf16.mxu0 0
        %336 = vmatmul.mubr.bf16.gmra.mrb[0].mxu0 %v273
        %v337 = vpop.f32.mrb[0].mxu0
        %v338 = vadd.f32 0.0, %v337
        %v339 = vpop.f32.mrb[0].mxu0
        %v340 = vpop.f32.mrb[0].mxu0
        %v341 = vadd.f32 0.0, %v340
        %v342 = vpop.f32.mrb[0].mxu0
        %343 = vmatprep.mubr.bf16.mxu0 0
        %344 = vmatmul.mubr.bf16.gmra.mrb[0].mxu0 %v276
        %v345 = vpop.f32.mrb[0].mxu0
        %v346 = vadd.f32 0.0, %v345
        %v347 = vpop.f32.mrb[0].mxu0
        %v348 = vpop.f32.mrb[0].mxu0
        %v349 = vadd.f32 0.0, %v348
        %v350 = vpop.f32.mrb[0].mxu0
        %351 = vmatprep.mubr.bf16.mxu0 0
        %352 = vmatmul.mubr.bf16.gmra.mrb[0].mxu0 %v279
        %v353 = vpop.f32.mrb[0].mxu0
        %v354 = vadd.f32 0.0, %v353
        %v355 = vpop.f32.mrb[0].mxu0
        %v356 = vpop.f32.mrb[0].mxu0
        %v357 = vadd.f32 0.0, %v356
        %v358 = vpop.f32.mrb[0].mxu0
        %359 = vmatprep.mubr.bf16.mxu0 0
        %360 = vmatmul.mubr.bf16.gmra.mrb[0].mxu0 %v282
        %v361 = vpop.f32.mrb[0].mxu0
        %v362 = vadd.f32 0.0, %v361
        %v363 = vpop.f32.mrb[0].mxu0
        %v364 = vpop.f32.mrb[0].mxu0
        %v365 = vadd.f32 0.0, %v364
        %v366 = vpop.f32.mrb[0].mxu0
        %367 = vdwg.mxu0
        %368 = vxpose.xlu0.b32.start [1/16] %v322, 128
        %369 = vxpose.xlu0.b32.cont [2/16] 0.0, 128
        %370 = vxpose.xlu0.b32.cont [3/16] 0.0, 128
        %371 = vxpose.xlu0.b32.cont [4/16] 0.0, 128
        %372 = vxpose.xlu0.b32.cont [5/16] 0.0, 128
        %373 = vxpose.xlu0.b32.cont [6/16] 0.0, 128
        %374 = vxpose.xlu0.b32.cont [7/16] 0.0, 128
        %375 = vxpose.xlu0.b32.cont [8/16] 0.0, 128
        %376 = vxpose.xlu0.b32.cont [9/16] 0.0, 128
        %377 = vxpose.xlu0.b32.cont [10/16] 0.0, 128
        %378 = vxpose.xlu0.b32.cont [11/16] 0.0, 128
        %379 = vxpose.xlu0.b32.cont [12/16] 0.0, 128
        %380 = vxpose.xlu0.b32.cont [13/16] 0.0, 128
        %381 = vxpose.xlu0.b32.cont [14/16] 0.0, 128
        %382 = vxpose.xlu0.b32.cont [15/16] 0.0, 128
        %383 = vxpose.xlu0.b32.end [16/16] 0.0, 128
        %v384 = vpop.trf.xlu0
        %v385 = vpop.trf.xlu0
        %v386 = vpop.trf.xlu0
        %v387 = vpop.trf.xlu0
        %v388 = vpop.trf.xlu0
        %v389 = vpop.trf.xlu0
        %v390 = vpop.trf.xlu0
        %v391 = vpop.trf.xlu0
        %v392 = vpop.trf.xlu0
        %v393 = vpop.trf.xlu0
        %v394 = vpop.trf.xlu0
        %v395 = vpop.trf.xlu0
        %v396 = vpop.trf.xlu0
        %v397 = vpop.trf.xlu0
        %v398 = vpop.trf.xlu0
        %v399 = vpop.trf.xlu0
        %400 = vxpose.xlu0.b32.start [1/16] %v325, 128
        %401 = vxpose.xlu0.b32.cont [2/16] 0.0, 128
        %402 = vxpose.xlu0.b32.cont [3/16] 0.0, 128
        %403 = vxpose.xlu0.b32.cont [4/16] 0.0, 128
        %404 = vxpose.xlu0.b32.cont [5/16] 0.0, 128
        %405 = vxpose.xlu0.b32.cont [6/16] 0.0, 128
        %406 = vxpose.xlu0.b32.cont [7/16] 0.0, 128
        %407 = vxpose.xlu0.b32.cont [8/16] 0.0, 128
        %408 = vxpose.xlu0.b32.cont [9/16] 0.0, 128
        %409 = vxpose.xlu0.b32.cont [10/16] 0.0, 128
        %410 = vxpose.xlu0.b32.cont [11/16] 0.0, 128
        %411 = vxpose.xlu0.b32.cont [12/16] 0.0, 128
        %412 = vxpose.xlu0.b32.cont [13/16] 0.0, 128
        %413 = vxpose.xlu0.b32.cont [14/16] 0.0, 128
        %414 = vxpose.xlu0.b32.cont [15/16] 0.0, 128
        %415 = vxpose.xlu0.b32.end [16/16] 0.0, 128
        %v416 = vpop.trf.xlu0
        %v417 = vpop.trf.xlu0
        %v418 = vpop.trf.xlu0
        %v419 = vpop.trf.xlu0
        %v420 = vpop.trf.xlu0
        %v421 = vpop.trf.xlu0
        %v422 = vpop.trf.xlu0
        %v423 = vpop.trf.xlu0
        %v424 = vpop.trf.xlu0
        %v425 = vpop.trf.xlu0
        %v426 = vpop.trf.xlu0
        %v427 = vpop.trf.xlu0
        %v428 = vpop.trf.xlu0
        %v429 = vpop.trf.xlu0
        %v430 = vpop.trf.xlu0
        %v431 = vpop.trf.xlu0
        %432 = vxpose.xlu0.b32.start [1/16] %v330, 128
        %433 = vxpose.xlu0.b32.cont [2/16] 0.0, 128
        %434 = vxpose.xlu0.b32.cont [3/16] 0.0, 128
        %435 = vxpose.xlu0.b32.cont [4/16] 0.0, 128
        %436 = vxpose.xlu0.b32.cont [5/16] 0.0, 128
        %437 = vxpose.xlu0.b32.cont [6/16] 0.0, 128
        %438 = vxpose.xlu0.b32.cont [7/16] 0.0, 128
        %439 = vxpose.xlu0.b32.cont [8/16] 0.0, 128
        %440 = vxpose.xlu0.b32.cont [9/16] 0.0, 128
        %441 = vxpose.xlu0.b32.cont [10/16] 0.0, 128
        %442 = vxpose.xlu0.b32.cont [11/16] 0.0, 128
        %443 = vxpose.xlu0.b32.cont [12/16] 0.0, 128
        %444 = vxpose.xlu0.b32.cont [13/16] 0.0, 128
        %445 = vxpose.xlu0.b32.cont [14/16] 0.0, 128
        %446 = vxpose.xlu0.b32.cont [15/16] 0.0, 128
        %447 = vxpose.xlu0.b32.end [16/16] 0.0, 128
        %v448 = vpop.trf.xlu0
        %v449 = vpop.trf.xlu0
        %v450 = vpop.trf.xlu0
        %v451 = vpop.trf.xlu0
        %v452 = vpop.trf.xlu0
        %v453 = vpop.trf.xlu0
        %v454 = vpop.trf.xlu0
        %v455 = vpop.trf.xlu0
        %v456 = vpop.trf.xlu0
        %v457 = vpop.trf.xlu0
        %v458 = vpop.trf.xlu0
        %v459 = vpop.trf.xlu0
        %v460 = vpop.trf.xlu0
        %v461 = vpop.trf.xlu0
        %v462 = vpop.trf.xlu0
        %v463 = vpop.trf.xlu0
        %464 = vxpose.xlu0.b32.start [1/16] %v333, 128
        %465 = vxpose.xlu0.b32.cont [2/16] 0.0, 128
        %466 = vxpose.xlu0.b32.cont [3/16] 0.0, 128
        %467 = vxpose.xlu0.b32.cont [4/16] 0.0, 128
        %468 = vxpose.xlu0.b32.cont [5/16] 0.0, 128
        %469 = vxpose.xlu0.b32.cont [6/16] 0.0, 128
        %470 = vxpose.xlu0.b32.cont [7/16] 0.0, 128
        %471 = vxpose.xlu0.b32.cont [8/16] 0.0, 128
        %472 = vxpose.xlu0.b32.cont [9/16] 0.0, 128
        %473 = vxpose.xlu0.b32.cont [10/16] 0.0, 128
        %474 = vxpose.xlu0.b32.cont [11/16] 0.0, 128
        %475 = vxpose.xlu0.b32.cont [12/16] 0.0, 128
        %476 = vxpose.xlu0.b32.cont [13/16] 0.0, 128
        %477 = vxpose.xlu0.b32.cont [14/16] 0.0, 128
        %478 = vxpose.xlu0.b32.cont [15/16] 0.0, 128
        %479 = vxpose.xlu0.b32.end [16/16] 0.0, 128
        %v480 = vpop.trf.xlu0
        %v481 = vpop.trf.xlu0
        %v482 = vpop.trf.xlu0
        %v483 = vpop.trf.xlu0
        %v484 = vpop.trf.xlu0
        %v485 = vpop.trf.xlu0
        %v486 = vpop.trf.xlu0
        %v487 = vpop.trf.xlu0
        %v488 = vpop.trf.xlu0
        %v489 = vpop.trf.xlu0
        %v490 = vpop.trf.xlu0
        %v491 = vpop.trf.xlu0
        %v492 = vpop.trf.xlu0
        %v493 = vpop.trf.xlu0
        %v494 = vpop.trf.xlu0
        %v495 = vpop.trf.xlu0
        %v496 = vpack.c.bf16 %v384, %v384
        %v497 = vpack.c.bf16 %v416, %v416
        %v498 = vpack.c.bf16 %v448, %v448
        %v499 = vpack.c.bf16 %v480, %v480
        %v500 = vpack.c.bf16 %v338, %v338
        %v501 = vpack.c.bf16 %v341, %v341
        %v502 = vpack.c.bf16 %v346, %v346
        %v503 = vpack.c.bf16 %v349, %v349
        %v504 = vpack.c.bf16 %v354, %v354
        %v505 = vpack.c.bf16 %v357, %v357
        %v506 = vpack.c.bf16 %v362, %v362
        %v507 = vpack.c.bf16 %v365, %v365
        %vm508 = vcmask 64512
        %v510 = vsel %vm508, %v496, 0
        %vm512 = vcmask 1043456
        %v514 = vsel %vm512, %v500, 0
        %516 = vmatprep.subr.bf16.mxu0 0
        %517 = vmatpush1.bf16.msra.mxu0 %v514
        %518 = vmatprep.subr.bf16.mxu0 0
        %519 = vmatpush1.bf16.msra.mxu0 0
        %520 = vmatprep.subr.bf16.mxu0 0
        %521 = vmatpush1.bf16.msra.mxu0 0
        %522 = vmatprep.subr.bf16.mxu0 0
        %523 = vmatpush1.bf16.msra.mxu0 0
        %524 = vmatprep.subr.bf16.mxu0 0
        %525 = vmatpush1.bf16.msra.mxu0 0
        %526 = vmatprep.subr.bf16.mxu0 0
        %527 = vmatpush1.bf16.msra.mxu0 0
        %528 = vmatprep.subr.bf16.mxu0 0
        %529 = vmatpush1.bf16.msra.mxu0 0
        %530 = vmatprep.subr.bf16.mxu0 0
        %531 = vmatpush1.bf16.msra.mxu0 0
        %532 = vmatprep.subr.bf16.mxu0 0
        %533 = vmatpush1.bf16.msra.mxu0 0
        %534 = vmatprep.subr.bf16.mxu0 0
        %535 = vmatpush1.bf16.msra.mxu0 0
        %536 = vmatprep.subr.bf16.mxu0 0
        %537 = vmatpush1.bf16.msra.mxu0 0
        %538 = vmatprep.subr.bf16.mxu0 0
        %539 = vmatpush1.bf16.msra.mxu0 0
        %540 = vmatprep.subr.bf16.mxu0 0
        %541 = vmatpush1.bf16.msra.mxu0 0
        %542 = vmatprep.subr.bf16.mxu0 0
        %543 = vmatpush1.bf16.msra.mxu0 0
        %544 = vmatprep.subr.bf16.mxu0 0
        %545 = vmatpush1.bf16.msra.mxu0 0
        %546 = vmatprep.subr.bf16.mxu0 0
        %547 = vmatpush1.bf16.msra.mxu0 0
        %548 = vmatprep.mubr.bf16.mxu0 0
        %549 = vmatmul.mubr.bf16.gmra.mrb[0].mxu0 %v510
        %v550 = vpop.f32.mrb[0].mxu0
        %v551 = vadd.f32 0.0, %v550
        %v552 = vpop.f32.mrb[0].mxu0
        %v553 = vpop.f32.mrb[0].mxu0
        %v554 = vpop.f32.mrb[0].mxu0
        %555 = vdwg.mxu0
        %v557 = vsel %vm508, %v497, 0
        %v560 = vsel %vm512, %v501, 0
        %562 = vmatprep.subr.bf16.mxu0 0
        %563 = vmatpush1.bf16.msra.mxu0 %v560
        %564 = vmatprep.subr.bf16.mxu0 0
        %565 = vmatpush1.bf16.msra.mxu0 0
        %566 = vmatprep.subr.bf16.mxu0 0
        %567 = vmatpush1.bf16.msra.mxu0 0
        %568 = vmatprep.subr.bf16.mxu0 0
        %569 = vmatpush1.bf16.msra.mxu0 0
        %570 = vmatprep.subr.bf16.mxu0 0
        %571 = vmatpush1.bf16.msra.mxu0 0
        %572 = vmatprep.subr.bf16.mxu0 0
        %573 = vmatpush1.bf16.msra.mxu0 0
        %574 = vmatprep.subr.bf16.mxu0 0
        %575 = vmatpush1.bf16.msra.mxu0 0
        %576 = vmatprep.subr.bf16.mxu0 0
        %577 = vmatpush1.bf16.msra.mxu0 0
        %578 = vmatprep.subr.bf16.mxu0 0
        %579 = vmatpush1.bf16.msra.mxu0 0
        %580 = vmatprep.subr.bf16.mxu0 0
        %581 = vmatpush1.bf16.msra.mxu0 0
        %582 = vmatprep.subr.bf16.mxu0 0
        %583 = vmatpush1.bf16.msra.mxu0 0
        %584 = vmatprep.subr.bf16.mxu0 0
        %585 = vmatpush1.bf16.msra.mxu0 0
        %586 = vmatprep.subr.bf16.mxu0 0
        %587 = vmatpush1.bf16.msra.mxu0 0
        %588 = vmatprep.subr.bf16.mxu0 0
        %589 = vmatpush1.bf16.msra.mxu0 0
        %590 = vmatprep.subr.bf16.mxu0 0
        %591 = vmatpush1.bf16.msra.mxu0 0
        %592 = vmatprep.subr.bf16.mxu0 0
        %593 = vmatpush1.bf16.msra.mxu0 0
        %594 = vmatprep.mubr.bf16.mxu0 0
        %595 = vmatmul.mubr.bf16.gmra.mrb[0].mxu0 %v557
        %v596 = vpop.f32.mrb[0].mxu0
        %v597 = vadd.f32 0.0, %v596
        %v598 = vpop.f32.mrb[0].mxu0
        %v599 = vpop.f32.mrb[0].mxu0
        %v600 = vpop.f32.mrb[0].mxu0
        %601 = vdwg.mxu0
        %v603 = vsel %vm508, %v498, 0
        %v606 = vsel %vm512, %v502, 0
        %608 = vmatprep.subr.bf16.mxu0 0
        %609 = vmatpush1.bf16.msra.mxu0 %v606
        %610 = vmatprep.subr.bf16.mxu0 0
        %611 = vmatpush1.bf16.msra.mxu0 0
        %612 = vmatprep.subr.bf16.mxu0 0
        %613 = vmatpush1.bf16.msra.mxu0 0
        %614 = vmatprep.subr.bf16.mxu0 0
        %615 = vmatpush1.bf16.msra.mxu0 0
        %616 = vmatprep.subr.bf16.mxu0 0
        %617 = vmatpush1.bf16.msra.mxu0 0
        %618 = vmatprep.subr.bf16.mxu0 0
        %619 = vmatpush1.bf16.msra.mxu0 0
        %620 = vmatprep.subr.bf16.mxu0 0
        %621 = vmatpush1.bf16.msra.mxu0 0
        %622 = vmatprep.subr.bf16.mxu0 0
        %623 = vmatpush1.bf16.msra.mxu0 0
        %624 = vmatprep.subr.bf16.mxu0 0
        %625 = vmatpush1.bf16.msra.mxu0 0
        %626 = vmatprep.subr.bf16.mxu0 0
        %627 = vmatpush1.bf16.msra.mxu0 0
        %628 = vmatprep.subr.bf16.mxu0 0
        %629 = vmatpush1.bf16.msra.mxu0 0
        %630 = vmatprep.subr.bf16.mxu0 0
        %631 = vmatpush1.bf16.msra.mxu0 0
        %632 = vmatprep.subr.bf16.mxu0 0
        %633 = vmatpush1.bf16.msra.mxu0 0
        %634 = vmatprep.subr.bf16.mxu0 0
        %635 = vmatpush1.bf16.msra.mxu0 0
        %636 = vmatprep.subr.bf16.mxu0 0
        %637 = vmatpush1.bf16.msra.mxu0 0
        %638 = vmatprep.subr.bf16.mxu0 0
        %639 = vmatpush1.bf16.msra.mxu0 0
        %640 = vmatprep.mubr.bf16.mxu0 0
        %641 = vmatmul.mubr.bf16.gmra.mrb[0].mxu0 %v603
        %v642 = vpop.f32.mrb[0].mxu0
        %v643 = vadd.f32 0.0, %v642
        %v644 = vpop.f32.mrb[0].mxu0
        %v645 = vpop.f32.mrb[0].mxu0
        %v646 = vpop.f32.mrb[0].mxu0
        %647 = vdwg.mxu0
        %v649 = vsel %vm508, %v499, 0
        %v652 = vsel %vm512, %v503, 0
        %654 = vmatprep.subr.bf16.mxu0 0
        %655 = vmatpush1.bf16.msra.mxu0 %v652
        %656 = vmatprep.subr.bf16.mxu0 0
        %657 = vmatpush1.bf16.msra.mxu0 0
        %658 = vmatprep.subr.bf16.mxu0 0
        %659 = vmatpush1.bf16.msra.mxu0 0
        %660 = vmatprep.subr.bf16.mxu0 0
        %661 = vmatpush1.bf16.msra.mxu0 0
        %662 = vmatprep.subr.bf16.mxu0 0
        %663 = vmatpush1.bf16.msra.mxu0 0
        %664 = vmatprep.subr.bf16.mxu0 0
        %665 = vmatpush1.bf16.msra.mxu0 0
        %666 = vmatprep.subr.bf16.mxu0 0
        %667 = vmatpush1.bf16.msra.mxu0 0
        %668 = vmatprep.subr.bf16.mxu0 0
        %669 = vmatpush1.bf16.msra.mxu0 0
        %670 = vmatprep.subr.bf16.mxu0 0
        %671 = vmatpush1.bf16.msra.mxu0 0
        %672 = vmatprep.subr.bf16.mxu0 0
        %673 = vmatpush1.bf16.msra.mxu0 0
        %674 = vmatprep.subr.bf16.mxu0 0
        %675 = vmatpush1.bf16.msra.mxu0 0
        %676 = vmatprep.subr.bf16.mxu0 0
        %677 = vmatpush1.bf16.msra.mxu0 0
        %678 = vmatprep.subr.bf16.mxu0 0
        %679 = vmatpush1.bf16.msra.mxu0 0
        %680 = vmatprep.subr.bf16.mxu0 0
        %681 = vmatpush1.bf16.msra.mxu0 0
        %682 = vmatprep.subr.bf16.mxu0 0
        %683 = vmatpush1.bf16.msra.mxu0 0
        %684 = vmatprep.subr.bf16.mxu0 0
        %685 = vmatpush1.bf16.msra.mxu0 0
        %686 = vmatprep.mubr.bf16.mxu0 0
        %687 = vmatmul.mubr.bf16.gmra.mrb[0].mxu0 %v649
        %v688 = vpop.f32.mrb[0].mxu0
        %v689 = vadd.f32 0.0, %v688
        %v690 = vpop.f32.mrb[0].mxu0
        %v691 = vpop.f32.mrb[0].mxu0
        %v692 = vpop.f32.mrb[0].mxu0
        %693 = vdwg.mxu0
        %v694 = vsel %vm508, %v551, -inf
        %695 = vmax.xlane.f32.xlu0 %v694
        %v696 = vpop.xlane.xlu0 %695
        %v697 = vsel %vm508, %v597, -inf
        %698 = vmax.xlane.f32.xlu0 %v697
        %v699 = vpop.xlane.xlu0 %698
        %v700 = vsel %vm508, %v643, -inf
        %701 = vmax.xlane.f32.xlu0 %v700
        %v702 = vpop.xlane.xlu0 %701
        %v703 = vsel %vm508, %v689, -inf
        %704 = vmax.xlane.f32.xlu0 %v703
        %v705 = vpop.xlane.xlu0 %704
        %v706 = vsub.f32 %v551, %v696
        %v707 = vsub.f32 %v597, %v699
        %v708 = vsub.f32 %v643, %v702
        %v709 = vsub.f32 %v689, %v705
        %v710 = vmul.f32 %v706, 1.442695
        %v711 = vpow.pop %v710
        %v712 = vmul.f32 %v707, 1.442695
        %v713 = vpow.pop %v712
        %v714 = vmul.f32 %v708, 1.442695
        %v715 = vpow.pop %v714
        %v716 = vmul.f32 %v709, 1.442695
        %v717 = vpow.pop %v716
        %v718 = vsel %vm508, %v711, 0.0
        %719 = vadd.xlane.f32.xlu0 %v718
        %v720 = vpop.xlane.xlu0 %719
        %v721 = vsel %vm508, %v713, 0.0
        %722 = vadd.xlane.f32.xlu0 %v721
        %v723 = vpop.xlane.xlu0 %722
        %v724 = vsel %vm508, %v715, 0.0
        %725 = vadd.xlane.f32.xlu0 %v724
        %v726 = vpop.xlane.xlu0 %725
        %v727 = vsel %vm508, %v717, 0.0
        %728 = vadd.xlane.f32.xlu0 %v727
        %v729 = vpop.xlane.xlu0 %728
        %v730 = vrcp.pop %v720
        %v731 = vrcp.pop %v723
        %v732 = vrcp.pop %v726
        %v733 = vrcp.pop %v729
        %v734 = vmul.f32 %v711, %v730
        %v735 = vmul.f32 %v713, %v731
        %v736 = vmul.f32 %v715, %v732
        %v737 = vmul.f32 %v717, %v733
        %v738 = vpack.c.bf16 %v734, %v734
        %v739 = vpack.c.bf16 %v735, %v735
        %v740 = vpack.c.bf16 %v736, %v736
        %v741 = vpack.c.bf16 %v737, %v737
        %v743 = vsel %vm508, %v504, 0
        %v746 = vsel %vm508, %v738, 0
        %748 = vmatprep.subr.bf16.mxu0 0
        %749 = vmatpush1.bf16.xpose.msra.mxu0 %v746
        %750 = vmatprep.subr.bf16.mxu0 0
        %751 = vmatpush1.bf16.xpose.msra.mxu0 0
        %752 = vmatprep.subr.bf16.mxu0 0
        %753 = vmatpush1.bf16.xpose.msra.mxu0 0
        %754 = vmatprep.subr.bf16.mxu0 0
        %755 = vmatpush1.bf16.xpose.msra.mxu0 0
        %756 = vmatprep.subr.bf16.mxu0 0
        %757 = vmatpush1.bf16.xpose.msra.mxu0 0
        %758 = vmatprep.subr.bf16.mxu0 0
        %759 = vmatpush1.bf16.xpose.msra.mxu0 0
        %760 = vmatprep.subr.bf16.mxu0 0
        %761 = vmatpush1.bf16.xpose.msra.mxu0 0
        %762 = vmatprep.subr.bf16.mxu0 0
        %763 = vmatpush1.bf16.xpose.msra.mxu0 0
        %764 = vmatprep.subr.bf16.mxu0 0
        %765 = vmatpush1.bf16.xpose.msra.mxu0 0
        %766 = vmatprep.subr.bf16.mxu0 0
        %767 = vmatpush1.bf16.xpose.msra.mxu0 0
        %768 = vmatprep.subr.bf16.mxu0 0
        %769 = vmatpush1.bf16.xpose.msra.mxu0 0
        %770 = vmatprep.subr.bf16.mxu0 0
        %771 = vmatpush1.bf16.xpose.msra.mxu0 0
        %772 = vmatprep.subr.bf16.mxu0 0
        %773 = vmatpush1.bf16.xpose.msra.mxu0 0
        %774 = vmatprep.subr.bf16.mxu0 0
        %775 = vmatpush1.bf16.xpose.msra.mxu0 0
        %776 = vmatprep.subr.bf16.mxu0 0
        %777 = vmatpush1.bf16.xpose.msra.mxu0 0
        %778 = vmatprep.subr.bf16.mxu0 0
        %779 = vmatpush1.bf16.xpose.msra.mxu0 0
        %780 = vmatprep.mubr.bf16.mxu0 0
        %781 = vmatmul.mubr.bf16.gmra.mrb[0].mxu0 %v743
        %v782 = vpop.f32.mrb[0].mxu0
        %v783 = vadd.f32 0.0, %v782
        %v784 = vpop.f32.mrb[0].mxu0
        %v785 = vpop.f32.mrb[0].mxu0
        %v786 = vpop.f32.mrb[0].mxu0
        %787 = vdwg.mxu0
        %v789 = vsel %vm508, %v505, 0
        %v792 = vsel %vm508, %v739, 0
        %794 = vmatprep.subr.bf16.mxu0 0
        %795 = vmatpush1.bf16.xpose.msra.mxu0 %v792
        %796 = vmatprep.subr.bf16.mxu0 0
        %797 = vmatpush1.bf16.xpose.msra.mxu0 0
        %798 = vmatprep.subr.bf16.mxu0 0
        %799 = vmatpush1.bf16.xpose.msra.mxu0 0
        %800 = vmatprep.subr.bf16.mxu0 0
        %801 = vmatpush1.bf16.xpose.msra.mxu0 0
        %802 = vmatprep.subr.bf16.mxu0 0
        %803 = vmatpush1.bf16.xpose.msra.mxu0 0
        %804 = vmatprep.subr.bf16.mxu0 0
        %805 = vmatpush1.bf16.xpose.msra.mxu0 0
        %806 = vmatprep.subr.bf16.mxu0 0
        %807 = vmatpush1.bf16.xpose.msra.mxu0 0
        %808 = vmatprep.subr.bf16.mxu0 0
        %809 = vmatpush1.bf16.xpose.msra.mxu0 0
        %810 = vmatprep.subr.bf16.mxu0 0
        %811 = vmatpush1.bf16.xpose.msra.mxu0 0
        %812 = vmatprep.subr.bf16.mxu0 0
        %813 = vmatpush1.bf16.xpose.msra.mxu0 0
        %814 = vmatprep.subr.bf16.mxu0 0
        %815 = vmatpush1.bf16.xpose.msra.mxu0 0
        %816 = vmatprep.subr.bf16.mxu0 0
        %817 = vmatpush1.bf16.xpose.msra.mxu0 0
        %818 = vmatprep.subr.bf16.mxu0 0
        %819 = vmatpush1.bf16.xpose.msra.mxu0 0
        %820 = vmatprep.subr.bf16.mxu0 0
        %821 = vmatpush1.bf16.xpose.msra.mxu0 0
        %822 = vmatprep.subr.bf16.mxu0 0
        %823 = vmatpush1.bf16.xpose.msra.mxu0 0
        %824 = vmatprep.subr.bf16.mxu0 0
        %825 = vmatpush1.bf16.xpose.msra.mxu0 0
        %826 = vmatprep.mubr.bf16.mxu0 0
        %827 = vmatmul.mubr.bf16.gmra.mrb[0].mxu0 %v789
        %v828 = vpop.f32.mrb[0].mxu0
        %v829 = vadd.f32 0.0, %v828
        %v830 = vpop.f32.mrb[0].mxu0
        %v831 = vpop.f32.mrb[0].mxu0
        %v832 = vpop.f32.mrb[0].mxu0
        %833 = vdwg.mxu0
        %v835 = vsel %vm508, %v506, 0
        %v838 = vsel %vm508, %v740, 0
        %840 = vmatprep.subr.bf16.mxu0 0
        %841 = vmatpush1.bf16.xpose.msra.mxu0 %v838
        %842 = vmatprep.subr.bf16.mxu0 0
        %843 = vmatpush1.bf16.xpose.msra.mxu0 0
        %844 = vmatprep.subr.bf16.mxu0 0
        %845 = vmatpush1.bf16.xpose.msra.mxu0 0
        %846 = vmatprep.subr.bf16.mxu0 0
        %847 = vmatpush1.bf16.xpose.msra.mxu0 0
        %848 = vmatprep.subr.bf16.mxu0 0
        %849 = vmatpush1.bf16.xpose.msra.mxu0 0
        %850 = vmatprep.subr.bf16.mxu0 0
        %851 = vmatpush1.bf16.xpose.msra.mxu0 0
        %852 = vmatprep.subr.bf16.mxu0 0
        %853 = vmatpush1.bf16.xpose.msra.mxu0 0
        %854 = vmatprep.subr.bf16.mxu0 0
        %855 = vmatpush1.bf16.xpose.msra.mxu0 0
        %856 = vmatprep.subr.bf16.mxu0 0
        %857 = vmatpush1.bf16.xpose.msra.mxu0 0
        %858 = vmatprep.subr.bf16.mxu0 0
        %859 = vmatpush1.bf16.xpose.msra.mxu0 0
        %860 = vmatprep.subr.bf16.mxu0 0
        %861 = vmatpush1.bf16.xpose.msra.mxu0 0
        %862 = vmatprep.subr.bf16.mxu0 0
        %863 = vmatpush1.bf16.xpose.msra.mxu0 0
        %864 = vmatprep.subr.bf16.mxu0 0
        %865 = vmatpush1.bf16.xpose.msra.mxu0 0
        %866 = vmatprep.subr.bf16.mxu0 0
        %867 = vmatpush1.bf16.xpose.msra.mxu0 0
        %868 = vmatprep.subr.bf16.mxu0 0
        %869 = vmatpush1.bf16.xpose.msra.mxu0 0
        %870 = vmatprep.subr.bf16.mxu0 0
        %871 = vmatpush1.bf16.xpose.msra.mxu0 0
        %872 = vmatprep.mubr.bf16.mxu0 0
        %873 = vmatmul.mubr.bf16.gmra.mrb[0].mxu0 %v835
        %v874 = vpop.f32.mrb[0].mxu0
        %v875 = vadd.f32 0.0, %v874
        %v876 = vpop.f32.mrb[0].mxu0
        %v877 = vpop.f32.mrb[0].mxu0
        %v878 = vpop.f32.mrb[0].mxu0
        %879 = vdwg.mxu0
        %v881 = vsel %vm508, %v507, 0
        %v884 = vsel %vm508, %v741, 0
        %886 = vmatprep.subr.bf16.mxu0 0
        %887 = vmatpush1.bf16.xpose.msra.mxu0 %v884
        %888 = vmatprep.subr.bf16.mxu0 0
        %889 = vmatpush1.bf16.xpose.msra.mxu0 0
        %890 = vmatprep.subr.bf16.mxu0 0
        %891 = vmatpush1.bf16.xpose.msra.mxu0 0
        %892 = vmatprep.subr.bf16.mxu0 0
        %893 = vmatpush1.bf16.xpose.msra.mxu0 0
        %894 = vmatprep.subr.bf16.mxu0 0
        %895 = vmatpush1.bf16.xpose.msra.mxu0 0
        %896 = vmatprep.subr.bf16.mxu0 0
        %897 = vmatpush1.bf16.xpose.msra.mxu0 0
        %898 = vmatprep.subr.bf16.mxu0 0
        %899 = vmatpush1.bf16.xpose.msra.mxu0 0
        %900 = vmatprep.subr.bf16.mxu0 0
        %901 = vmatpush1.bf16.xpose.msra.mxu0 0
        %902 = vmatprep.subr.bf16.mxu0 0
        %903 = vmatpush1.bf16.xpose.msra.mxu0 0
        %904 = vmatprep.subr.bf16.mxu0 0
        %905 = vmatpush1.bf16.xpose.msra.mxu0 0
        %906 = vmatprep.subr.bf16.mxu0 0
        %907 = vmatpush1.bf16.xpose.msra.mxu0 0
        %908 = vmatprep.subr.bf16.mxu0 0
        %909 = vmatpush1.bf16.xpose.msra.mxu0 0
        %910 = vmatprep.subr.bf16.mxu0 0
        %911 = vmatpush1.bf16.xpose.msra.mxu0 0
        %912 = vmatprep.subr.bf16.mxu0 0
        %913 = vmatpush1.bf16.xpose.msra.mxu0 0
        %914 = vmatprep.subr.bf16.mxu0 0
        %915 = vmatpush1.bf16.xpose.msra.mxu0 0
        %916 = vmatprep.subr.bf16.mxu0 0
        %917 = vmatpush1.bf16.xpose.msra.mxu0 0
        %918 = vmatprep.mubr.bf16.mxu0 0
        %919 = vmatmul.mubr.bf16.gmra.mrb[0].mxu0 %v881
        %v920 = vpop.f32.mrb[0].mxu0
        %v921 = vadd.f32 0.0, %v920
        %v922 = vpop.f32.mrb[0].mxu0
        %v923 = vpop.f32.mrb[0].mxu0
        %v924 = vpop.f32.mrb[0].mxu0
        %925 = vdwg.mxu0
        %926 = vxpose.xlu0.b32.start [1/16] %v783, 128
        %927 = vxpose.xlu0.b32.cont [2/16] %v829, 128
        %928 = vxpose.xlu0.b32.cont [3/16] %v875, 128
        %929 = vxpose.xlu0.b32.cont [4/16] %v921, 128
        %930 = vxpose.xlu0.b32.cont [5/16] 0.0, 128
        %931 = vxpose.xlu0.b32.cont [6/16] 0.0, 128
        %932 = vxpose.xlu0.b32.cont [7/16] 0.0, 128
        %933 = vxpose.xlu0.b32.cont [8/16] 0.0, 128
        %934 = vxpose.xlu0.b32.cont [9/16] 0.0, 128
        %935 = vxpose.xlu0.b32.cont [10/16] 0.0, 128
        %936 = vxpose.xlu0.b32.cont [11/16] 0.0, 128
        %937 = vxpose.xlu0.b32.cont [12/16] 0.0, 128
        %938 = vxpose.xlu0.b32.cont [13/16] 0.0, 128
        %939 = vxpose.xlu0.b32.cont [14/16] 0.0, 128
        %940 = vxpose.xlu0.b32.cont [15/16] 0.0, 128
        %941 = vxpose.xlu0.b32.end [16/16] 0.0, 128
        %v942 = vpop.trf.xlu0
        %v943 = vpop.trf.xlu0
        %v944 = vpop.trf.xlu0
        %v945 = vpop.trf.xlu0
        %v946 = vpop.trf.xlu0
        %v947 = vpop.trf.xlu0
        %v948 = vpop.trf.xlu0
        %v949 = vpop.trf.xlu0
        %v950 = vpop.trf.xlu0
        %v951 = vpop.trf.xlu0
        %v952 = vpop.trf.xlu0
        %v953 = vpop.trf.xlu0
        %v954 = vpop.trf.xlu0
        %v955 = vpop.trf.xlu0
        %v956 = vpop.trf.xlu0
        %v957 = vpop.trf.xlu0
        %v958 = vpack.c.bf16 %v942, %v942
        %v959 = vld [vmem:[%s2] sm:$0xf]
        %v960 = vld [vmem:[%s2 + $0x4] sm:$0xf]
        %v961 = vld [vmem:[%s2 + $0x8] sm:$0xf]
        %v962 = vld [vmem:[%s2 + $0xc] sm:$0xf]
        %v967 = vunpack.c.l.b16 %v959
        %v968 = vunpack.c.l.b16 %v960
        %v969 = vunpack.c.l.b16 %v961
        %v970 = vunpack.c.l.b16 %v962
        %v971 = vpack.c.b16 %v968, %v967
        %v972 = vpack.c.b16 %v970, %v969
        %v976 = vsel %vm265, %v958, 0
        %978 = vmatprep.subr.bf16.mxu0 0
        %979 = vmatpush1.bf16.msra.mxu0 %v971
        %980 = vmatprep.subr.bf16.mxu0 0
        %981 = vmatpush1.bf16.msra.mxu0 %v972
        %982 = vmatprep.subr.bf16.mxu0 0
        %983 = vmatpush1.bf16.msra.mxu0 0
        %984 = vmatprep.subr.bf16.mxu0 0
        %985 = vmatpush1.bf16.msra.mxu0 0
        %986 = vmatprep.subr.bf16.mxu0 0
        %987 = vmatpush1.bf16.msra.mxu0 0
        %988 = vmatprep.subr.bf16.mxu0 0
        %989 = vmatpush1.bf16.msra.mxu0 0
        %990 = vmatprep.subr.bf16.mxu0 0
        %991 = vmatpush1.bf16.msra.mxu0 0
        %992 = vmatprep.subr.bf16.mxu0 0
        %993 = vmatpush1.bf16.msra.mxu0 0
        %994 = vmatprep.subr.bf16.mxu0 0
        %995 = vmatpush1.bf16.msra.mxu0 0
        %996 = vmatprep.subr.bf16.mxu0 0
        %997 = vmatpush1.bf16.msra.mxu0 0
        %998 = vmatprep.subr.bf16.mxu0 0
        %999 = vmatpush1.bf16.msra.mxu0 0
        %1000 = vmatprep.subr.bf16.mxu0 0
        %1001 = vmatpush1.bf16.msra.mxu0 0
        %1002 = vmatprep.subr.bf16.mxu0 0
        %1003 = vmatpush1.bf16.msra.mxu0 0
        %1004 = vmatprep.subr.bf16.mxu0 0
        %1005 = vmatpush1.bf16.msra.mxu0 0
        %1006 = vmatprep.subr.bf16.mxu0 0
        %1007 = vmatpush1.bf16.msra.mxu0 0
        %1008 = vmatprep.subr.bf16.mxu0 0
        %1009 = vmatpush1.bf16.msra.mxu0 0
        %1010 = vmatprep.mubr.bf16.mxu0 0
        %1011 = vmatmul.mubr.bf16.gmra.mrb[0].mxu0 %v976
        %v1012 = vpop.f32.mrb[0].mxu0
        %v1013 = vadd.f32 0.0, %v1012
        %v1014 = vpop.f32.mrb[0].mxu0
        %v1015 = vpop.f32.mrb[0].mxu0
        %v1016 = vpop.f32.mrb[0].mxu0
        %1017 = vdwg.mxu0
        %v1018 = vadd.f32 %v221, %v1013
        %v1019 = vsel %vm265, %v1018, 0.0
        %1020 = vadd.xlane.f32.xlu0 %v1019
        %v1021 = vpop.xlane.xlu0 %1020
        %v1022 = vrcp.pop 32.0
        %v1023 = vmul.f32 %v1021, %v1022
        %v1024 = vsub.f32 %v1018, %v1023
        %v1025 = vmul.f32 %v1024, %v1024
        %v1026 = vsel %vm265, %v1025, 0.0
        %1027 = vadd.xlane.f32.xlu0 %v1026
        %v1028 = vpop.xlane.xlu0 %1027
        %v1029 = vmul.f32 %v1028, %v1022
        %v1030 = vadd.f32 %v1029, 1e-05
        %v1031 = vrsqrt.pop %v1030
        %v1032 = vmul.f32 %v1024, %v1031
        %v1033 = vld [vmem:[%s3] sm:$0x1]
        %v1035 = vlaneseq
        %v1036 = vshrl.u32 %v1035, 7
        %v1037 = vsub.s32 0, %v1036
        %v1038 = vrot.slane %v1033, %v1037
        %v1040 = vmul.f32 %v1032, %v1038
        %v1041 = vld [vmem:[%s4] sm:$0x1]
        %v1043 = vlaneseq
        %v1044 = vshrl.u32 %v1043, 7
        %v1045 = vsub.s32 0, %v1044
        %v1046 = vrot.slane %v1041, %v1045
        %v1048 = vadd.f32 %v1040, %v1046
        %1049 = vst.msk [vmem:[%s215] sm:$0xff] %vm265, %v1048
        %s1050 = sand.u32 %s137, 1
        %s1051 = scalar_lea.sflag [#allocation3], %s1050
        %s1052 = sand.u32 %s137, 1
        %s1053 = smul.addr %s1052, 8
        %s1054 = scalar_lea.vmem [#allocation2], %s1053
        // Predicated region
        $region41: #{tpu_custom_call.1} parent=39 // pred_check
          %p1055 = pneg %p147
        $region42: #{tpu_custom_call.1} parent=39 // pred_check_branch
          %1057 = sbr.rel (%p1055) target = $region44
        $region43: #{tpu_custom_call.1} parent=39 // pred_region
          %s1059 = ssub.s32 128, 128
          %1060 = vsyncadd %s1051, %s1059
          %s1061 = smul.addr %s19, 128
          %s1062 = scalar_lea.hbm %s5, %s1061
          %s1064 = sshll.u32 %s1054, 4
          %s1065 = int_to_ptr.vmem [resolvable:$true] %s1064
          %1067 = dma.vmem_to_hbm [thread:$0]  %s1065, 128, %s1062, %s1051
        $region44: #{tpu_custom_call.1} parent=39 // pred_fallthru
          _
      $region40: #{tpu_custom_call.1} parent=5 // pred_fallthru
        _
      %p1068 = scmp.le.s32.totalorder 2, %s14
      // Predicated region
      $region45: #{tpu_custom_call.1} parent=5 // pred_check
        %p1069 = pneg %p1068
      $region46: #{tpu_custom_call.1} parent=5 // pred_check_branch
        %1071 = sbr.rel (%p1069) target = $region48
      $region47: #{tpu_custom_call.1} parent=5 // pred_region
        %s1072 = ssub.s32 %s14, 2
        // Predicated region
        $region49: #{tpu_custom_call.1} parent=47 // pred_check
          %p1073 = pneg %p153
        $region50: #{tpu_custom_call.1} parent=47 // pred_check_branch
          %1075 = sbr.rel (%p1073) target = $region52
        $region51: #{tpu_custom_call.1} parent=47 // pred_region
          %s1076 = sand.u32 %s138, 1
          %s1077 = scalar_lea.sflag [#allocation3], %s1076
          %s1078 = sand.u32 %s138, 1
          %s1079 = smul.addr %s1078, 8
          %s1080 = scalar_lea.vmem [#allocation2], %s1079
          %1081 = dma.done %s1077, 128
        $region52: #{tpu_custom_call.1} parent=47 // pred_fallthru
          _
      $region48: #{tpu_custom_call.1} parent=5 // pred_fallthru
        _
    $region6: #{tpu_custom_call.1} parent=1 // loop_footer
      %s18 = sadd.s32 1, %s14
    $region7: #{tpu_custom_call.1} parent=1 // loop_footer_branch
      %13 = sbr.rel target = $region3
    $region8: #{tpu_custom_call.1} parent=1 // loop_exit
      _
    %1082 = vsyncpa [#allocation3], 1
    %s1083 = scalar_lea.sflag [#allocation3], 1
    %1084 = vsyncpa %s1083, 1

</llo_original>
